<compile_context>
chip_gen: v7x
topology: tpu7x:2x2x1
jax: 0.10.0
libtpu: 0.0.40
codegen_flags: <defaults>
</compile_context>

<pallas_src>
import jax
import jax.numpy as jnp
from jax.experimental import pallas as pl
from jax.experimental.pallas import tpu as pltpu


def _ffn_kernel(x_ref, w1_ref, b1_ref, w2_ref, b2_ref, o_ref, acc_ref):
    # x_ref : (TM, D)  f32 token tile (resident across the H axis)
    # w1_ref: (D, TH)  bf16 hidden chunk of W1
    # b1_ref: (1, TH)  f32
    # w2_ref: (TH, D)  bf16 hidden chunk of W2
    # b2_ref: (1, D)   f32
    # o_ref : (TM, D)  output tile (written once, at the last H chunk)
    # acc_ref:(TM, D)  f32 VMEM accumulator
    hk = pl.program_id(1)

    @pl.when(hk == 0)
    def _():
        acc_ref[...] = jnp.zeros_like(acc_ref)

    x = x_ref[...].astype(jnp.bfloat16)                       # MXU input in bf16
    # --- Linear 1 chunk (MXU, f32 accumulate) + bias + ReLU (VPU, f32) ---
    h = jnp.dot(x, w1_ref[...], preferred_element_type=jnp.float32)
    h = jnp.maximum(h + b1_ref[...], 0.0)
    # --- Linear 2 chunk (MXU, f32 accumulate into the resident accumulator) ---
    acc_ref[...] += jnp.dot(h.astype(jnp.bfloat16), w2_ref[...],
                            preferred_element_type=jnp.float32)

    @pl.when(hk == pl.num_programs(1) - 1)
    def _():
        # Dropout (eval mode) == identity.
        o_ref[...] = (acc_ref[...] + b2_ref[...]).astype(o_ref.dtype)


def _vmem_budget_bytes():
    """~85% of physical VMEM per core; conservative fallback if unqueryable."""
    try:
        cap = int(pltpu.get_tpu_info().vmem_capacity_bytes)
    except Exception:
        cap = 64 << 20  # safe on every generation (v7x physical minimum)
    return max(int(cap * 0.85), 32 << 20)


def _pick_hidden_tile(H, th_max):
    """Largest multiple of 128 that divides H and is <= th_max (else full H).

    Requiring TH | H keeps every hidden chunk fully valid, so no masking of
    padded columns is needed inside the kernel."""
    if H <= th_max:
        return H
    th = (th_max // 128) * 128
    while th >= 128:
        if H % th == 0:
            return th
        th -= 128
    return H


def feed_forward(x, w1, b1, w2, b2, *, tm=None, th=None):
    """x: (B, T, D) float32.  w1: (D, 4D), b1: (1, 4D), w2: (4D, D), b2: (1, D).
    Returns (B, T, D) in x.dtype (Dropout in eval mode == identity)."""
    B, T, D = x.shape
    H = w1.shape[1]
    M = B * T
    x2d = x.reshape(M, D)

    vmem_cap = _vmem_budget_bytes()

    # Generation-aware tile defaults: big token tiles where VMEM allows
    # (v5e/v6e 128 MiB), smaller on the 64 MiB v7x part.
    if tm is None:
        tm = 512 if vmem_cap >= (96 << 20) else 256
    if th is None:
        th = 1024

    # Token-tile: multiple of 8 (sublane), or the full extent for tiny inputs.
    # No wrapper-side padding: Pallas masks the partial last block, and rows
    # are independent so padded garbage never reaches valid outputs.
    TM = tm if M >= tm else M
    # Hidden-chunk: multiple of 128 (lane) dividing H, or full H.
    TH = _pick_hidden_tile(H, th)

    num_m = pl.cdiv(M, TM)
    num_h = H // TH

    # bf16 weights: ~2x MXU rate on v6e/v7x, half the per-chunk DMA traffic.
    w1b = w1.astype(jnp.bfloat16)
    w2b = w2.astype(jnp.bfloat16)
    b1f = b1.astype(jnp.float32)
    b2f = b2.astype(jnp.float32)

    out_itemsize = jnp.dtype(x.dtype).itemsize

    # VMEM footprint (double-buffered pipelined blocks counted at 2x,
    # scratch / intermediates once):
    footprint = (
        2 * TM * D * 4            # x tile (f32, double-buffered)
        + 2 * D * TH * 2          # W1 chunk (bf16, double-buffered)
        + 2 * TH * 4              # b1 chunk
        + 2 * TH * D * 2          # W2 chunk (bf16, double-buffered)
        + D * 4                   # b2
        + 2 * TM * D * out_itemsize   # out tile (double-buffered)
        + TM * D * 4              # f32 accumulator scratch
        + TM * TH * 4             # h (f32)
        + TM * TH * 2             # h cast to bf16
    )
    vmem_limit = int(min(max(int(footprint * 1.3), 32 << 20), vmem_cap))

    out2d = pl.pallas_call(
        _ffn_kernel,
        out_shape=jax.ShapeDtypeStruct((M, D), x.dtype),
        grid=(num_m, num_h),                      # H (reduction) axis last
        in_specs=[
            pl.BlockSpec((TM, D), lambda i, hk: (i, 0)),    # x tile
            pl.BlockSpec((D, TH), lambda i, hk: (0, hk)),   # W1 hidden chunk
            pl.BlockSpec((1, TH), lambda i, hk: (0, hk)),   # b1 hidden chunk
            pl.BlockSpec((TH, D), lambda i, hk: (hk, 0)),   # W2 hidden chunk
            pl.BlockSpec((1, D), lambda i, hk: (0, 0)),     # b2 (resident)
        ],
        out_specs=pl.BlockSpec((TM, D), lambda i, hk: (i, 0)),
        scratch_shapes=[pltpu.VMEM((TM, D), jnp.float32)],
        compiler_params=pltpu.CompilerParams(
            dimension_semantics=("parallel", "arbitrary"),
            vmem_limit_bytes=vmem_limit,
        ),
    )(x2d, w1b, b1f, w2b, b2f)

    return out2d.reshape(B, T, D)


def init_params(key, n_embd):
    """Deterministic init matching nn.Linear shapes (weights stored transposed:
    (in, out)) so the kernel does x @ W directly."""
    hidden = 4 * n_embd
    k1, k2, k3, k4 = jax.random.split(key, 4)
    bound1 = 1.0 / jnp.sqrt(n_embd)
    bound2 = 1.0 / jnp.sqrt(hidden)
    w1 = jax.random.uniform(k1, (n_embd, hidden), jnp.float32, -bound1, bound1)
    b1 = jax.random.uniform(k2, (1, hidden), jnp.float32, -bound1, bound1)
    w2 = jax.random.uniform(k3, (hidden, n_embd), jnp.float32, -bound2, bound2)
    b2 = jax.random.uniform(k4, (1, n_embd), jnp.float32, -bound2, bound2)
    return w1, b1, w2, b2


def _reference_bf16(x2d, w1, b1, w2, b2):
    """Pure-JAX reference following the same bf16-input / f32-accumulate path."""
    h = jnp.dot(x2d.astype(jnp.bfloat16), w1.astype(jnp.bfloat16),
                preferred_element_type=jnp.float32) + b1
    h = jnp.maximum(h, 0.0)
    y = jnp.dot(h.astype(jnp.bfloat16), w2.astype(jnp.bfloat16),
                preferred_element_type=jnp.float32) + b2
    return y


if __name__ == "__main__":
    key = jax.random.PRNGKey(0)
    B, T, n_embd = 2, 8, 128          # hidden = 4 * n_embd = 512
    dropout_p = 0.1                   # eval mode -> identity

    kx, kp = jax.random.split(key)
    x = jax.random.normal(kx, (B, T, n_embd), jnp.float32)
    w1, b1, w2, b2 = init_params(kp, n_embd)

    out = feed_forward(x, w1, b1, w2, b2)
    out = jax.block_until_ready(out)

    # Reference 1: identical bf16/f32 compute path (tight tolerance).
    ref = _reference_bf16(x.reshape(-1, n_embd), w1, b1, w2, b2)
    ref = ref.reshape(B, T, n_embd)
    assert jnp.allclose(out, ref, atol=2e-3, rtol=2e-3), "mismatch vs bf16 ref"

    # Reference 2: full-f32 math (loose tolerance -> bf16 weight rounding).
    ref32 = jnp.maximum(x.reshape(-1, n_embd) @ w1 + b1, 0.0) @ w2 + b2
    ref32 = ref32.reshape(B, T, n_embd)
    assert jnp.allclose(out, ref32, atol=5e-2, rtol=5e-2), "mismatch vs f32 ref"

    # Exercise the multi-tile path: 2 token tiles x 4 hidden chunks.
    out_tiled = jax.block_until_ready(
        feed_forward(x, w1, b1, w2, b2, tm=8, th=128))
    assert jnp.allclose(out_tiled, ref, atol=2e-3, rtol=2e-3), \
        "mismatch vs bf16 ref (tiled path)"

    print("KERNEL_OK")
</pallas_src>

<mosaic_0001>
module attributes {stable_mosaic.version = 11 : i64} {
  func.func @_ffn_kernel(%arg0: i32, %arg1: i32, %arg2: memref<16x128xf32, #tpu.memory_space<vmem>>, %arg3: memref<128x512xbf16, #tpu.memory_space<vmem>>, %arg4: memref<1x512xf32, #tpu.memory_space<vmem>>, %arg5: memref<512x128xbf16, #tpu.memory_space<vmem>>, %arg6: memref<1x128xf32, #tpu.memory_space<vmem>>, %arg7: memref<16x128xf32, #tpu.memory_space<vmem>>, %arg8: memref<16x128xf32, #tpu.memory_space<vmem>>) attributes {dimension_semantics = [#tpu.dimension_semantics<parallel>, #tpu.dimension_semantics<arbitrary>], iteration_bounds = array<i64: 1, 1>, scalar_prefetch = 0 : i64, scratch_operands = 1 : i64, tpu.core_type = #tpu.core_type<tc>, window_params = [{transform_indices = @transform_0, window_bounds = array<i64: 16, 128>}, {transform_indices = @transform_1, window_bounds = array<i64: 128, 512>}, {transform_indices = @transform_2, window_bounds = array<i64: 1, 512>}, {transform_indices = @transform_3, window_bounds = array<i64: 512, 128>}, {pipeline_mode = #tpu.pipeline_mode<synchronous>, transform_indices = @transform_4, window_bounds = array<i64: 1, 128>}, {transform_indices = @transform_5, window_bounds = array<i64: 16, 128>}]} {
    %c0_i32 = arith.constant 0 : i32
    %0 = arith.cmpi eq, %arg1, %c0_i32 : i32
    %1 = arith.extui %0 : i1 to i32
    %c0_i32_0 = arith.constant 0 : i32
    %2 = arith.cmpi ne, %1, %c0_i32_0 : i32
    scf.if %2 {
      %cst_16 = arith.constant 0.000000e+00 : f32
      %21 = vector.broadcast %cst_16 : f32 to vector<16x128xf32>
      %c0_17 = arith.constant 0 : index
      %c0_18 = arith.constant 0 : index
      %22 = vector.load %arg8[%c0_17, %c0_18] : memref<16x128xf32, #tpu.memory_space<vmem>>, vector<16x128xf32>
      tpu.vector_store %arg8[%c0_17, %c0_18], %21 {strides = array<i32>} : memref<16x128xf32, #tpu.memory_space<vmem>>, vector<16x128xf32>,
    } else {
    }
    %c0 = arith.constant 0 : index
    %c0_1 = arith.constant 0 : index
    %3 = vector.load %arg2[%c0, %c0_1] : memref<16x128xf32, #tpu.memory_space<vmem>>, vector<16x128xf32>
    %4 = arith.truncf %3 : vector<16x128xf32> to vector<16x128xbf16>
    %c0_2 = arith.constant 0 : index
    %c0_3 = arith.constant 0 : index
    %5 = vector.load %arg3[%c0_2, %c0_3] : memref<128x512xbf16, #tpu.memory_space<vmem>>, vector<128x512xbf16>
    %cst = arith.constant dense<0.000000e+00> : vector<16x512xf32>
    %6 = tpu.matmul %4, %5, %cst {dimension_numbers = #tpu.dot_dimension_numbers<[1], [0], [0], [1], [0, 0, 1, 1], [], []>} : vector<16x128xbf16>, vector<128x512xbf16>, vector<16x512xf32> -> vector<16x512xf32>
    %c0_4 = arith.constant 0 : index
    %c0_5 = arith.constant 0 : index
    %7 = vector.load %arg4[%c0_4, %c0_5] : memref<1x512xf32, #tpu.memory_space<vmem>>, vector<1x512xf32>
    %8 = vector.broadcast %7 : vector<1x512xf32> to vector<16x512xf32>
    %9 = arith.addf %6, %8 : vector<16x512xf32>
    %cst_6 = arith.constant 0.000000e+00 : f32
    %10 = vector.broadcast %cst_6 : f32 to vector<16x512xf32>
    %11 = arith.maximumf %9, %10 : vector<16x512xf32>
    %c0_7 = arith.constant 0 : index
    %c0_8 = arith.constant 0 : index
    %12 = vector.load %arg8[%c0_7, %c0_8] : memref<16x128xf32, #tpu.memory_space<vmem>>, vector<16x128xf32>
    %13 = arith.truncf %11 : vector<16x512xf32> to vector<16x512xbf16>
    %c0_9 = arith.constant 0 : index
    %c0_10 = arith.constant 0 : index
    %14 = vector.load %arg5[%c0_9, %c0_10] : memref<512x128xbf16, #tpu.memory_space<vmem>>, vector<512x128xbf16>
    %cst_11 = arith.constant dense<0.000000e+00> : vector<16x128xf32>
    %15 = tpu.matmul %13, %14, %cst_11 {dimension_numbers = #tpu.dot_dimension_numbers<[1], [0], [0], [1], [0, 0, 1, 1], [], []>} : vector<16x512xbf16>, vector<512x128xbf16>, vector<16x128xf32> -> vector<16x128xf32>
    %16 = arith.addf %12, %15 : vector<16x128xf32>
    %c0_12 = arith.constant 0 : index
    %c0_13 = arith.constant 0 : index
    %17 = vector.load %arg8[%c0_12, %c0_13] : memref<16x128xf32, #tpu.memory_space<vmem>>, vector<16x128xf32>
    tpu.vector_store %arg8[%c0_12, %c0_13], %16 {strides = array<i32>} : memref<16x128xf32, #tpu.memory_space<vmem>>, vector<16x128xf32>,
    %c0_i32_14 = arith.constant 0 : i32
    %18 = arith.cmpi eq, %arg1, %c0_i32_14 : i32
    %19 = arith.extui %18 : i1 to i32
    %c0_i32_15 = arith.constant 0 : i32
    %20 = arith.cmpi ne, %19, %c0_i32_15 : i32
    scf.if %20 {
      %c0_16 = arith.constant 0 : index
      %c0_17 = arith.constant 0 : index
      %21 = vector.load %arg8[%c0_16, %c0_17] : memref<16x128xf32, #tpu.memory_space<vmem>>, vector<16x128xf32>
      %c0_18 = arith.constant 0 : index
      %c0_19 = arith.constant 0 : index
      %22 = vector.load %arg6[%c0_18, %c0_19] : memref<1x128xf32, #tpu.memory_space<vmem>>, vector<1x128xf32>
      %23 = vector.broadcast %22 : vector<1x128xf32> to vector<16x128xf32>
      %24 = arith.addf %21, %23 : vector<16x128xf32>
      %c0_20 = arith.constant 0 : index
      %c0_21 = arith.constant 0 : index
      %25 = vector.load %arg7[%c0_20, %c0_21] : memref<16x128xf32, #tpu.memory_space<vmem>>, vector<16x128xf32>
      tpu.vector_store %arg7[%c0_20, %c0_21], %24 {strides = array<i32>} : memref<16x128xf32, #tpu.memory_space<vmem>>, vector<16x128xf32>,
    } else {
    }
    return
  }
  func.func @transform_0(%arg0: i32, %arg1: i32) -> (i32, i32) {
    %c0_i32 = arith.constant 0 : i32
    %c0_i32_0 = arith.constant 0 : i32
    return %arg0, %c0_i32 : i32, i32
  }
  func.func @transform_1(%arg0: i32, %arg1: i32) -> (i32, i32) {
    %c0_i32 = arith.constant 0 : i32
    %c0_i32_0 = arith.constant 0 : i32
    return %c0_i32, %arg1 : i32, i32
  }
  func.func @transform_2(%arg0: i32, %arg1: i32) -> (i32, i32) {
    %c0_i32 = arith.constant 0 : i32
    %c0_i32_0 = arith.constant 0 : i32
    return %c0_i32, %arg1 : i32, i32
  }
  func.func @transform_3(%arg0: i32, %arg1: i32) -> (i32, i32) {
    %c0_i32 = arith.constant 0 : i32
    %c0_i32_0 = arith.constant 0 : i32
    return %arg1, %c0_i32 : i32, i32
  }
  func.func @transform_4(%arg0: i32, %arg1: i32) -> (i32, i32) {
    %c0_i32 = arith.constant 0 : i32
    %c0_i32_0 = arith.constant 0 : i32
    %c0_i32_1 = arith.constant 0 : i32
    return %c0_i32, %c0_i32_0 : i32, i32
  }
  func.func @transform_5(%arg0: i32, %arg1: i32) -> (i32, i32) {
    %c0_i32 = arith.constant 0 : i32
    %c0_i32_0 = arith.constant 0 : i32
    return %arg0, %c0_i32 : i32, i32
  }
}

</mosaic_0001>

<llo_original>
// kernel: tpu_custom_call.1
$region0: #{tpu_custom_call.1}
  #allocation0 [shape = 'u32[]', space=smem, size = 0x4, offset = 0x4, fixed_abs, tag = 'smem constant byte address 0x4 - core index']
  #allocation1 [shape = 'u32[144,128]{1,0:T(1,128)}', space=vmem, size = 0x12000, scoped, tag = 'internal scratch']
  #allocation2 [shape = 'f32[16,128]{1,0:T(8,128)}', space=vmem, size = 0x2000, scoped, tag = 'scratch operand']
  %s0 = inlined_call_operand.hbm [shape: f32[16,128], index: 0, kind: input, shape index: {}]
  %s1 = inlined_call_operand.hbm [shape: bf16[128,512], index: 1, kind: input, shape index: {}]
  %s2 = inlined_call_operand.vmem [shape: f32[1,512], index: 2, kind: input, shape index: {}]
  %s3 = inlined_call_operand.hbm [shape: bf16[512,128], index: 3, kind: input, shape index: {}]
  %s4 = inlined_call_operand.vmem [shape: f32[1,128], index: 4, kind: input, shape index: {}]
  %s5 = inlined_call_operand.hbm [shape: f32[16,128], index: 5, kind: output, shape index: {}]
  %s6 = sld [smem:[#allocation0]]
  $region50: #{tpu_custom_call.1} parent=0
    _
  %s8 = ssub.s32 1, %s6
  %s9 = scalar_select 0, %s8, %s6
  $region1: #{tpu_custom_call.1} parent=0
    #allocation3 [shape = 'u8[8192]{0}', space=vmem, size = 0x2000, scoped, tag = 'input window, operand 0, single buffered']
    #allocation4 [shape = 's32[1]{0}', space=sflag, size = 0x4, scoped, tag = 'scoped memory for tpu_custom_call.1']
    #allocation5 [shape = 's32[1]{0}', space=sflag, size = 0x4, scoped, tag = 'scoped memory for tpu_custom_call.1']
    #allocation6 [shape = 'u8[131072]{0}', space=vmem, size = 0x20000, scoped, tag = 'input window, operand 1, single buffered']
    #allocation7 [shape = 's32[1]{0}', space=sflag, size = 0x4, scoped, tag = 'scoped memory for tpu_custom_call.1']
    #allocation8 [shape = 'u8[131072]{0}', space=vmem, size = 0x20000, scoped, tag = 'input window, operand 3, single buffered']
    #allocation9 [shape = 'u8[8192]{0}', space=vmem, size = 0x2000, scoped, tag = 'output window, operand 0, single buffered']
    %10 = vsyncpa [#allocation4], 0
    %11 = vsyncpa [#allocation7], 0
    %12 = vsyncpa [#allocation5], 0
    // Predicated region
    $region2: #{tpu_custom_call.1} parent=1 // pred_check
      _
    $region3: #{tpu_custom_call.1} parent=1 // pred_check_branch
      %14 = sbr.rel (0) target = $region5
    $region4: #{tpu_custom_call.1} parent=1 // pred_region
      %s16 = ssub.s32 256, 256
      %17 = vsyncadd [#allocation4], %s16
      %s18 = sshll.u32 [#allocation3], 4
      %s19 = int_to_ptr.vmem [resolvable:$true] %s18
      %24 = dma.hbm_to_vmem [thread:$0]  %s0, 256, %s19, [#allocation4], 128, 128, 8
    $region5: #{tpu_custom_call.1} parent=1 // pred_fallthru
      _
    // Predicated region
    $region6: #{tpu_custom_call.1} parent=1 // pred_check
      _
    $region7: #{tpu_custom_call.1} parent=1 // pred_check_branch
      %26 = sbr.rel (0) target = $region9
    $region8: #{tpu_custom_call.1} parent=1 // pred_region
      %s28 = ssub.s32 4096, 4096
      %29 = vsyncadd [#allocation7], %s28
      %s30 = sshll.u32 [#allocation6], 4
      %s31 = int_to_ptr.vmem [resolvable:$true] %s30
      %36 = dma.hbm_to_vmem [thread:$0]  %s1, 4096, %s31, [#allocation7], 256, 256, 16
    $region9: #{tpu_custom_call.1} parent=1 // pred_fallthru
      _
    // Predicated region
    $region10: #{tpu_custom_call.1} parent=1 // pred_check
      _
    $region11: #{tpu_custom_call.1} parent=1 // pred_check_branch
      %38 = sbr.rel (0) target = $region13
    $region12: #{tpu_custom_call.1} parent=1 // pred_region
      _
    $region13: #{tpu_custom_call.1} parent=1 // pred_fallthru
      _
    // Predicated region
    $region14: #{tpu_custom_call.1} parent=1 // pred_check
      _
    $region15: #{tpu_custom_call.1} parent=1 // pred_check_branch
      %40 = sbr.rel (0) target = $region17
    $region16: #{tpu_custom_call.1} parent=1 // pred_region
      %s42 = ssub.s32 4096, 4096
      %43 = vsyncadd [#allocation7], %s42
      %s44 = sshll.u32 [#allocation8], 4
      %s45 = int_to_ptr.vmem [resolvable:$true] %s44
      %50 = dma.hbm_to_vmem [thread:$0]  %s3, 4096, %s45, [#allocation7], 64, 64, 4
    $region17: #{tpu_custom_call.1} parent=1 // pred_fallthru
      _
    // Predicated region
    $region18: #{tpu_custom_call.1} parent=1 // pred_check
      _
    $region19: #{tpu_custom_call.1} parent=1 // pred_check_branch
      %52 = sbr.rel (0) target = $region21
    $region20: #{tpu_custom_call.1} parent=1 // pred_region
      _
    $region21: #{tpu_custom_call.1} parent=1 // pred_fallthru
      _
    // Predicated region
    $region22: #{tpu_custom_call.1} parent=1 // pred_check
      _
    $region23: #{tpu_custom_call.1} parent=1 // pred_check_branch
      %54 = sbr.rel (0) target = $region25
    $region24: #{tpu_custom_call.1} parent=1 // pred_region
      %55 = dma.done [#allocation4], 256
    $region25: #{tpu_custom_call.1} parent=1 // pred_fallthru
      _
    // Predicated region
    $region26: #{tpu_custom_call.1} parent=1 // pred_check
      _
    $region27: #{tpu_custom_call.1} parent=1 // pred_check_branch
      %57 = sbr.rel (0) target = $region29
    $region28: #{tpu_custom_call.1} parent=1 // pred_region
      %58 = dma.done [#allocation7], 4096
    $region29: #{tpu_custom_call.1} parent=1 // pred_fallthru
      _
    // Predicated region
    $region30: #{tpu_custom_call.1} parent=1 // pred_check
      _
    $region31: #{tpu_custom_call.1} parent=1 // pred_check_branch
      %60 = sbr.rel (0) target = $region33
    $region32: #{tpu_custom_call.1} parent=1 // pred_region
      %61 = dma.done [#allocation7], 4096
    $region33: #{tpu_custom_call.1} parent=1 // pred_fallthru
      _
    %p63 = scmp.eq.s32.totalorder 0, 0
    // Predicated region
    $region34: #{tpu_custom_call.1} parent=1 // pred_check
      %p64 = pneg %p63
    $region35: #{tpu_custom_call.1} parent=1 // pred_check_branch
      %66 = sbr.rel (%p64) target = $region37
    $region36: #{tpu_custom_call.1} parent=1 // pred_region
      %67 = vst [vmem:[#allocation2] sm:$0xff] 0.0
      %68 = vst [vmem:[#allocation2 + $0x8] sm:$0xff] 0.0
    $region37: #{tpu_custom_call.1} parent=1 // pred_fallthru
      _
    %v69 = vld [vmem:[#allocation3] sm:$0xff]
    %v70 = vld [vmem:[#allocation3 + $0x8] sm:$0xff]
    %v71 = vpack.c.bf16 %v70, %v69
    %v72 = vld [vmem:[#allocation6] sm:$0xff]
    %v73 = vld [vmem:[#allocation6 + $0x8] sm:$0xff]
    %v74 = vld [vmem:[#allocation6 + $0x10] sm:$0xff]
    %v75 = vld [vmem:[#allocation6 + $0x18] sm:$0xff]
    %v76 = vld [vmem:[#allocation6 + $0x20] sm:$0xff]
    %v77 = vld [vmem:[#allocation6 + $0x28] sm:$0xff]
    %v78 = vld [vmem:[#allocation6 + $0x30] sm:$0xff]
    %v79 = vld [vmem:[#allocation6 + $0x38] sm:$0xff]
    %v80 = vld [vmem:[#allocation6 + $0x40] sm:$0xff]
    %v81 = vld [vmem:[#allocation6 + $0x48] sm:$0xff]
    %v82 = vld [vmem:[#allocation6 + $0x50] sm:$0xff]
    %v83 = vld [vmem:[#allocation6 + $0x58] sm:$0xff]
    %v84 = vld [vmem:[#allocation6 + $0x60] sm:$0xff]
    %v85 = vld [vmem:[#allocation6 + $0x68] sm:$0xff]
    %v86 = vld [vmem:[#allocation6 + $0x70] sm:$0xff]
    %v87 = vld [vmem:[#allocation6 + $0x78] sm:$0xff]
    %v88 = vld [vmem:[#allocation6 + $0x80] sm:$0xff]
    %v89 = vld [vmem:[#allocation6 + $0x88] sm:$0xff]
    %v90 = vld [vmem:[#allocation6 + $0x90] sm:$0xff]
    %v91 = vld [vmem:[#allocation6 + $0x98] sm:$0xff]
    %v92 = vld [vmem:[#allocation6 + $0xa0] sm:$0xff]
    %v93 = vld [vmem:[#allocation6 + $0xa8] sm:$0xff]
    %v94 = vld [vmem:[#allocation6 + $0xb0] sm:$0xff]
    %v95 = vld [vmem:[#allocation6 + $0xb8] sm:$0xff]
    %v96 = vld [vmem:[#allocation6 + $0xc0] sm:$0xff]
    %v97 = vld [vmem:[#allocation6 + $0xc8] sm:$0xff]
    %v98 = vld [vmem:[#allocation6 + $0xd0] sm:$0xff]
    %v99 = vld [vmem:[#allocation6 + $0xd8] sm:$0xff]
    %v100 = vld [vmem:[#allocation6 + $0xe0] sm:$0xff]
    %v101 = vld [vmem:[#allocation6 + $0xe8] sm:$0xff]
    %v102 = vld [vmem:[#allocation6 + $0xf0] sm:$0xff]
    %v103 = vld [vmem:[#allocation6 + $0xf8] sm:$0xff]
    %v104 = vld [vmem:[%s2] sm:$0xf]
    %v106 = vlaneseq
    %v107 = vshrl.u32 %v106, 7
    %v108 = vsub.s32 0, %v107
    %v109 = vrot.slane %v104, %v108
    %v110 = vlaneseq
    %v111 = vshrl.u32 %v110, 7
    %v112 = vsub.s32 1, %v111
    %v113 = vrot.slane %v104, %v112
    %v114 = vlaneseq
    %v115 = vshrl.u32 %v114, 7
    %v116 = vsub.s32 2, %v115
    %v117 = vrot.slane %v104, %v116
    %v118 = vlaneseq
    %v119 = vshrl.u32 %v118, 7
    %v120 = vsub.s32 3, %v119
    %v121 = vrot.slane %v104, %v120
    %v158 = vunpack.c.l.b16 %v72
    %v159 = vunpack.c.h.b16 %v72
    %v160 = vunpack.c.l.b16 %v73
    %v161 = vunpack.c.h.b16 %v73
    %v162 = vunpack.c.l.b16 %v74
    %v163 = vunpack.c.h.b16 %v74
    %v164 = vunpack.c.l.b16 %v75
    %v165 = vunpack.c.h.b16 %v75
    %v166 = vunpack.c.l.b16 %v76
    %v167 = vunpack.c.h.b16 %v76
    %v168 = vunpack.c.l.b16 %v77
    %v169 = vunpack.c.h.b16 %v77
    %v170 = vunpack.c.l.b16 %v78
    %v171 = vunpack.c.h.b16 %v78
    %v172 = vunpack.c.l.b16 %v79
    %v173 = vunpack.c.h.b16 %v79
    %v174 = vunpack.c.l.b16 %v80
    %v175 = vunpack.c.h.b16 %v80
    %v176 = vunpack.c.l.b16 %v81
    %v177 = vunpack.c.h.b16 %v81
    %v178 = vunpack.c.l.b16 %v82
    %v179 = vunpack.c.h.b16 %v82
    %v180 = vunpack.c.l.b16 %v83
    %v181 = vunpack.c.h.b16 %v83
    %v182 = vunpack.c.l.b16 %v84
    %v183 = vunpack.c.h.b16 %v84
    %v184 = vunpack.c.l.b16 %v85
    %v185 = vunpack.c.h.b16 %v85
    %v186 = vunpack.c.l.b16 %v86
    %v187 = vunpack.c.h.b16 %v86
    %v188 = vunpack.c.l.b16 %v87
    %v189 = vunpack.c.h.b16 %v87
    %v190 = vunpack.c.l.b16 %v88
    %v191 = vunpack.c.h.b16 %v88
    %v192 = vunpack.c.l.b16 %v89
    %v193 = vunpack.c.h.b16 %v89
    %v194 = vunpack.c.l.b16 %v90
    %v195 = vunpack.c.h.b16 %v90
    %v196 = vunpack.c.l.b16 %v91
    %v197 = vunpack.c.h.b16 %v91
    %v198 = vunpack.c.l.b16 %v92
    %v199 = vunpack.c.h.b16 %v92
    %v200 = vunpack.c.l.b16 %v93
    %v201 = vunpack.c.h.b16 %v93
    %v202 = vunpack.c.l.b16 %v94
    %v203 = vunpack.c.h.b16 %v94
    %v204 = vunpack.c.l.b16 %v95
    %v205 = vunpack.c.h.b16 %v95
    %v206 = vunpack.c.l.b16 %v96
    %v207 = vunpack.c.h.b16 %v96
    %v208 = vunpack.c.l.b16 %v97
    %v209 = vunpack.c.h.b16 %v97
    %v210 = vunpack.c.l.b16 %v98
    %v211 = vunpack.c.h.b16 %v98
    %v212 = vunpack.c.l.b16 %v99
    %v213 = vunpack.c.h.b16 %v99
    %v214 = vunpack.c.l.b16 %v100
    %v215 = vunpack.c.h.b16 %v100
    %v216 = vunpack.c.l.b16 %v101
    %v217 = vunpack.c.h.b16 %v101
    %v218 = vunpack.c.l.b16 %v102
    %v219 = vunpack.c.h.b16 %v102
    %v220 = vunpack.c.l.b16 %v103
    %v221 = vunpack.c.h.b16 %v103
    %v222 = vpack.c.b16 %v162, %v158
    %v223 = vpack.c.b16 %v163, %v159
    %v224 = vpack.c.b16 %v164, %v160
    %v225 = vpack.c.b16 %v165, %v161
    %v226 = vpack.c.b16 %v170, %v166
    %v227 = vpack.c.b16 %v171, %v167
    %v228 = vpack.c.b16 %v172, %v168
    %v229 = vpack.c.b16 %v173, %v169
    %v230 = vpack.c.b16 %v178, %v174
    %v231 = vpack.c.b16 %v179, %v175
    %v232 = vpack.c.b16 %v180, %v176
    %v233 = vpack.c.b16 %v181, %v177
    %v234 = vpack.c.b16 %v186, %v182
    %v235 = vpack.c.b16 %v187, %v183
    %v236 = vpack.c.b16 %v188, %v184
    %v237 = vpack.c.b16 %v189, %v185
    %v238 = vpack.c.b16 %v194, %v190
    %v239 = vpack.c.b16 %v195, %v191
    %v240 = vpack.c.b16 %v196, %v192
    %v241 = vpack.c.b16 %v197, %v193
    %v242 = vpack.c.b16 %v202, %v198
    %v243 = vpack.c.b16 %v203, %v199
    %v244 = vpack.c.b16 %v204, %v200
    %v245 = vpack.c.b16 %v205, %v201
    %v246 = vpack.c.b16 %v210, %v206
    %v247 = vpack.c.b16 %v211, %v207
    %v248 = vpack.c.b16 %v212, %v208
    %v249 = vpack.c.b16 %v213, %v209
    %v250 = vpack.c.b16 %v218, %v214
    %v251 = vpack.c.b16 %v219, %v215
    %v252 = vpack.c.b16 %v220, %v216
    %v253 = vpack.c.b16 %v221, %v217
    %286 = vmatprep.subr.bf16.mxu0 %v223
    %287 = vmatpush1.bf16.msra.mxu0 %v222
    %288 = vmatprep.subr.bf16.mxu0 %v227
    %289 = vmatpush1.bf16.msra.mxu0 %v226
    %290 = vmatprep.subr.bf16.mxu0 %v231
    %291 = vmatpush1.bf16.msra.mxu0 %v230
    %292 = vmatprep.subr.bf16.mxu0 %v235
    %293 = vmatpush1.bf16.msra.mxu0 %v234
    %294 = vmatprep.subr.bf16.mxu0 %v239
    %295 = vmatpush1.bf16.msra.mxu0 %v238
    %296 = vmatprep.subr.bf16.mxu0 %v243
    %297 = vmatpush1.bf16.msra.mxu0 %v242
    %298 = vmatprep.subr.bf16.mxu0 %v247
    %299 = vmatpush1.bf16.msra.mxu0 %v246
    %300 = vmatprep.subr.bf16.mxu0 %v251
    %301 = vmatpush1.bf16.msra.mxu0 %v250
    %302 = vmatprep.subr.bf16.mxu0 0
    %303 = vmatpush1.bf16.msra.mxu0 0
    %304 = vmatprep.subr.bf16.mxu0 0
    %305 = vmatpush1.bf16.msra.mxu0 0
    %306 = vmatprep.subr.bf16.mxu0 0
    %307 = vmatpush1.bf16.msra.mxu0 0
    %308 = vmatprep.subr.bf16.mxu0 0
    %309 = vmatpush1.bf16.msra.mxu0 0
    %310 = vmatprep.subr.bf16.mxu0 0
    %311 = vmatpush1.bf16.msra.mxu0 0
    %312 = vmatprep.subr.bf16.mxu0 0
    %313 = vmatpush1.bf16.msra.mxu0 0
    %314 = vmatprep.subr.bf16.mxu0 0
    %315 = vmatpush1.bf16.msra.mxu0 0
    %316 = vmatprep.subr.bf16.mxu0 0
    %317 = vmatpush1.bf16.msra.mxu0 0
    %318 = vmatprep.mubr.bf16.mxu0 0
    %319 = vmatmul.mubr.bf16.gmra.mrb[0].mxu0 %v71
    %v320 = vpop.f32.mrb[0].mxu0
    %v321 = vadd.f32 %v109, %v320
    %v322 = vpop.f32.mrb[0].mxu0
    %v323 = vadd.f32 %v113, %v322
    %v324 = vpop.f32.mrb[0].mxu0
    %v325 = vadd.f32 %v109, %v324
    %v326 = vpop.f32.mrb[0].mxu0
    %v327 = vadd.f32 %v113, %v326
    %328 = vdwg.mxu0
    %329 = vmatprep.subr.bf16.mxu0 %v225
    %330 = vmatpush1.bf16.msra.mxu0 %v224
    %331 = vmatprep.subr.bf16.mxu0 %v229
    %332 = vmatpush1.bf16.msra.mxu0 %v228
    %333 = vmatprep.subr.bf16.mxu0 %v233
    %334 = vmatpush1.bf16.msra.mxu0 %v232
    %335 = vmatprep.subr.bf16.mxu0 %v237
    %336 = vmatpush1.bf16.msra.mxu0 %v236
    %337 = vmatprep.subr.bf16.mxu0 %v241
    %338 = vmatpush1.bf16.msra.mxu0 %v240
    %339 = vmatprep.subr.bf16.mxu0 %v245
    %340 = vmatpush1.bf16.msra.mxu0 %v244
    %341 = vmatprep.subr.bf16.mxu0 %v249
    %342 = vmatpush1.bf16.msra.mxu0 %v248
    %343 = vmatprep.subr.bf16.mxu0 %v253
    %344 = vmatpush1.bf16.msra.mxu0 %v252
    %345 = vmatprep.subr.bf16.mxu0 0
    %346 = vmatpush1.bf16.msra.mxu0 0
    %347 = vmatprep.subr.bf16.mxu0 0
    %348 = vmatpush1.bf16.msra.mxu0 0
    %349 = vmatprep.subr.bf16.mxu0 0
    %350 = vmatpush1.bf16.msra.mxu0 0
    %351 = vmatprep.subr.bf16.mxu0 0
    %352 = vmatpush1.bf16.msra.mxu0 0
    %353 = vmatprep.subr.bf16.mxu0 0
    %354 = vmatpush1.bf16.msra.mxu0 0
    %355 = vmatprep.subr.bf16.mxu0 0
    %356 = vmatpush1.bf16.msra.mxu0 0
    %357 = vmatprep.subr.bf16.mxu0 0
    %358 = vmatpush1.bf16.msra.mxu0 0
    %359 = vmatprep.subr.bf16.mxu0 0
    %360 = vmatpush1.bf16.msra.mxu0 0
    %361 = vmatprep.mubr.bf16.mxu0 0
    %362 = vmatmul.mubr.bf16.gmra.mrb[0].mxu0 %v71
    %v363 = vpop.f32.mrb[0].mxu0
    %v364 = vadd.f32 %v117, %v363
    %v365 = vpop.f32.mrb[0].mxu0
    %v366 = vadd.f32 %v121, %v365
    %v367 = vpop.f32.mrb[0].mxu0
    %v368 = vadd.f32 %v117, %v367
    %v369 = vpop.f32.mrb[0].mxu0
    %v370 = vadd.f32 %v121, %v369
    %371 = vdwg.mxu0
    %v372 = vmax.f32 %v321, 0.0
    %v373 = vmax.f32 %v323, 0.0
    %v374 = vmax.f32 %v364, 0.0
    %v375 = vmax.f32 %v366, 0.0
    %v376 = vmax.f32 %v325, 0.0
    %v377 = vmax.f32 %v327, 0.0
    %v378 = vmax.f32 %v368, 0.0
    %v379 = vmax.f32 %v370, 0.0
    %v380 = vld [vmem:[#allocation2] sm:$0xff]
    %v381 = vld [vmem:[#allocation2 + $0x8] sm:$0xff]
    %v382 = vpack.c.bf16 %v376, %v372
    %v383 = vpack.c.bf16 %v377, %v373
    %v384 = vpack.c.bf16 %v378, %v374
    %v385 = vpack.c.bf16 %v379, %v375
    %v386 = vld [vmem:[#allocation8] sm:$0xf]
    %v387 = vld [vmem:[#allocation8 + $0x4] sm:$0xf]
    %v388 = vld [vmem:[#allocation8 + $0x8] sm:$0xf]
    %v389 = vld [vmem:[#allocation8 + $0xc] sm:$0xf]
    %v390 = vld [vmem:[#allocation8 + $0x10] sm:$0xf]
    %v391 = vld [vmem:[#allocation8 + $0x14] sm:$0xf]
    %v392 = vld [vmem:[#allocation8 + $0x18] sm:$0xf]
    %v393 = vld [vmem:[#allocation8 + $0x1c] sm:$0xf]
    %v394 = vld [vmem:[#allocation8 + $0x20] sm:$0xf]
    %v395 = vld [vmem:[#allocation8 + $0x24] sm:$0xf]
    %v396 = vld [vmem:[#allocation8 + $0x28] sm:$0xf]
    %v397 = vld [vmem:[#allocation8 + $0x2c] sm:$0xf]
    %v398 = vld [vmem:[#allocation8 + $0x30] sm:$0xf]
    %v399 = vld [vmem:[#allocation8 + $0x34] sm:$0xf]
    %v400 = vld [vmem:[#allocation8 + $0x38] sm:$0xf]
    %v401 = vld [vmem:[#allocation8 + $0x3c] sm:$0xf]
    %v402 = vld [vmem:[#allocation8 + $0x40] sm:$0xf]
    %v403 = vld [vmem:[#allocation8 + $0x44] sm:$0xf]
    %v404 = vld [vmem:[#allocation8 + $0x48] sm:$0xf]
    %v405 = vld [vmem:[#allocation8 + $0x4c] sm:$0xf]
    %v406 = vld [vmem:[#allocation8 + $0x50] sm:$0xf]
    %v407 = vld [vmem:[#allocation8 + $0x54] sm:$0xf]
    %v408 = vld [vmem:[#allocation8 + $0x58] sm:$0xf]
    %v409 = vld [vmem:[#allocation8 + $0x5c] sm:$0xf]
    %v410 = vld [vmem:[#allocation8 + $0x60] sm:$0xf]
    %v411 = vld [vmem:[#allocation8 + $0x64] sm:$0xf]
    %v412 = vld [vmem:[#allocation8 + $0x68] sm:$0xf]
    %v413 = vld [vmem:[#allocation8 + $0x6c] sm:$0xf]
    %v414 = vld [vmem:[#allocation8 + $0x70] sm:$0xf]
    %v415 = vld [vmem:[#allocation8 + $0x74] sm:$0xf]
    %v416 = vld [vmem:[#allocation8 + $0x78] sm:$0xf]
    %v417 = vld [vmem:[#allocation8 + $0x7c] sm:$0xf]
    %v418 = vld [vmem:[#allocation8 + $0x80] sm:$0xf]
    %v419 = vld [vmem:[#allocation8 + $0x84] sm:$0xf]
    %v420 = vld [vmem:[#allocation8 + $0x88] sm:$0xf]
    %v421 = vld [vmem:[#allocation8 + $0x8c] sm:$0xf]
    %v422 = vld [vmem:[#allocation8 + $0x90] sm:$0xf]
    %v423 = vld [vmem:[#allocation8 + $0x94] sm:$0xf]
    %v424 = vld [vmem:[#allocation8 + $0x98] sm:$0xf]
    %v425 = vld [vmem:[#allocation8 + $0x9c] sm:$0xf]
    %v426 = vld [vmem:[#allocation8 + $0xa0] sm:$0xf]
    %v427 = vld [vmem:[#allocation8 + $0xa4] sm:$0xf]
    %v428 = vld [vmem:[#allocation8 + $0xa8] sm:$0xf]
    %v429 = vld [vmem:[#allocation8 + $0xac] sm:$0xf]
    %v430 = vld [vmem:[#allocation8 + $0xb0] sm:$0xf]
    %v431 = vld [vmem:[#allocation8 + $0xb4] sm:$0xf]
    %v432 = vld [vmem:[#allocation8 + $0xb8] sm:$0xf]
    %v433 = vld [vmem:[#allocation8 + $0xbc] sm:$0xf]
    %v434 = vld [vmem:[#allocation8 + $0xc0] sm:$0xf]
    %v435 = vld [vmem:[#allocation8 + $0xc4] sm:$0xf]
    %v436 = vld [vmem:[#allocation8 + $0xc8] sm:$0xf]
    %v437 = vld [vmem:[#allocation8 + $0xcc] sm:$0xf]
    %v438 = vld [vmem:[#allocation8 + $0xd0] sm:$0xf]
    %v439 = vld [vmem:[#allocation8 + $0xd4] sm:$0xf]
    %v440 = vld [vmem:[#allocation8 + $0xd8] sm:$0xf]
    %v441 = vld [vmem:[#allocation8 + $0xdc] sm:$0xf]
    %v442 = vld [vmem:[#allocation8 + $0xe0] sm:$0xf]
    %v443 = vld [vmem:[#allocation8 + $0xe4] sm:$0xf]
    %v444 = vld [vmem:[#allocation8 + $0xe8] sm:$0xf]
    %v445 = vld [vmem:[#allocation8 + $0xec] sm:$0xf]
    %v446 = vld [vmem:[#allocation8 + $0xf0] sm:$0xf]
    %v447 = vld [vmem:[#allocation8 + $0xf4] sm:$0xf]
    %v448 = vld [vmem:[#allocation8 + $0xf8] sm:$0xf]
    %v449 = vld [vmem:[#allocation8 + $0xfc] sm:$0xf]
    %v514 = vunpack.c.l.b16 %v386
    %v515 = vunpack.c.l.b16 %v387
    %v516 = vunpack.c.l.b16 %v388
    %v517 = vunpack.c.l.b16 %v389
    %v518 = vunpack.c.l.b16 %v390
    %v519 = vunpack.c.l.b16 %v391
    %v520 = vunpack.c.l.b16 %v392
    %v521 = vunpack.c.l.b16 %v393
    %v522 = vunpack.c.l.b16 %v394
    %v523 = vunpack.c.l.b16 %v395
    %v524 = vunpack.c.l.b16 %v396
    %v525 = vunpack.c.l.b16 %v397
    %v526 = vunpack.c.l.b16 %v398
    %v527 = vunpack.c.l.b16 %v399
    %v528 = vunpack.c.l.b16 %v400
    %v529 = vunpack.c.l.b16 %v401
    %v530 = vunpack.c.l.b16 %v402
    %v531 = vunpack.c.l.b16 %v403
    %v532 = vunpack.c.l.b16 %v404
    %v533 = vunpack.c.l.b16 %v405
    %v534 = vunpack.c.l.b16 %v406
    %v535 = vunpack.c.l.b16 %v407
    %v536 = vunpack.c.l.b16 %v408
    %v537 = vunpack.c.l.b16 %v409
    %v538 = vunpack.c.l.b16 %v410
    %v539 = vunpack.c.l.b16 %v411
    %v540 = vunpack.c.l.b16 %v412
    %v541 = vunpack.c.l.b16 %v413
    %v542 = vunpack.c.l.b16 %v414
    %v543 = vunpack.c.l.b16 %v415
    %v544 = vunpack.c.l.b16 %v416
    %v545 = vunpack.c.l.b16 %v417
    %v546 = vunpack.c.l.b16 %v418
    %v547 = vunpack.c.l.b16 %v419
    %v548 = vunpack.c.l.b16 %v420
    %v549 = vunpack.c.l.b16 %v421
    %v550 = vunpack.c.l.b16 %v422
    %v551 = vunpack.c.l.b16 %v423
    %v552 = vunpack.c.l.b16 %v424
    %v553 = vunpack.c.l.b16 %v425
    %v554 = vunpack.c.l.b16 %v426
    %v555 = vunpack.c.l.b16 %v427
    %v556 = vunpack.c.l.b16 %v428
    %v557 = vunpack.c.l.b16 %v429
    %v558 = vunpack.c.l.b16 %v430
    %v559 = vunpack.c.l.b16 %v431
    %v560 = vunpack.c.l.b16 %v432
    %v561 = vunpack.c.l.b16 %v433
    %v562 = vunpack.c.l.b16 %v434
    %v563 = vunpack.c.l.b16 %v435
    %v564 = vunpack.c.l.b16 %v436
    %v565 = vunpack.c.l.b16 %v437
    %v566 = vunpack.c.l.b16 %v438
    %v567 = vunpack.c.l.b16 %v439
    %v568 = vunpack.c.l.b16 %v440
    %v569 = vunpack.c.l.b16 %v441
    %v570 = vunpack.c.l.b16 %v442
    %v571 = vunpack.c.l.b16 %v443
    %v572 = vunpack.c.l.b16 %v444
    %v573 = vunpack.c.l.b16 %v445
    %v574 = vunpack.c.l.b16 %v446
    %v575 = vunpack.c.l.b16 %v447
    %v576 = vunpack.c.l.b16 %v448
    %v577 = vunpack.c.l.b16 %v449
    %v578 = vpack.c.b16 %v515, %v514
    %v579 = vpack.c.b16 %v517, %v516
    %v580 = vpack.c.b16 %v519, %v518
    %v581 = vpack.c.b16 %v521, %v520
    %v582 = vpack.c.b16 %v523, %v522
    %v583 = vpack.c.b16 %v525, %v524
    %v584 = vpack.c.b16 %v527, %v526
    %v585 = vpack.c.b16 %v529, %v528
    %v586 = vpack.c.b16 %v531, %v530
    %v587 = vpack.c.b16 %v533, %v532
    %v588 = vpack.c.b16 %v535, %v534
    %v589 = vpack.c.b16 %v537, %v536
    %v590 = vpack.c.b16 %v539, %v538
    %v591 = vpack.c.b16 %v541, %v540
    %v592 = vpack.c.b16 %v543, %v542
    %v593 = vpack.c.b16 %v545, %v544
    %v594 = vpack.c.b16 %v547, %v546
    %v595 = vpack.c.b16 %v549, %v548
    %v596 = vpack.c.b16 %v551, %v550
    %v597 = vpack.c.b16 %v553, %v552
    %v598 = vpack.c.b16 %v555, %v554
    %v599 = vpack.c.b16 %v557, %v556
    %v600 = vpack.c.b16 %v559, %v558
    %v601 = vpack.c.b16 %v561, %v560
    %v602 = vpack.c.b16 %v563, %v562
    %v603 = vpack.c.b16 %v565, %v564
    %v604 = vpack.c.b16 %v567, %v566
    %v605 = vpack.c.b16 %v569, %v568
    %v606 = vpack.c.b16 %v571, %v570
    %v607 = vpack.c.b16 %v573, %v572
    %v608 = vpack.c.b16 %v575, %v574
    %v609 = vpack.c.b16 %v577, %v576
    %642 = vmatprep.subr.bf16.mxu0 0
    %643 = vmatpush1.bf16.msra.mxu0 %v578
    %644 = vmatprep.subr.bf16.mxu0 0
    %645 = vmatpush1.bf16.msra.mxu0 %v579
    %646 = vmatprep.subr.bf16.mxu0 0
    %647 = vmatpush1.bf16.msra.mxu0 %v580
    %648 = vmatprep.subr.bf16.mxu0 0
    %649 = vmatpush1.bf16.msra.mxu0 %v581
    %650 = vmatprep.subr.bf16.mxu0 0
    %651 = vmatpush1.bf16.msra.mxu0 %v582
    %652 = vmatprep.subr.bf16.mxu0 0
    %653 = vmatpush1.bf16.msra.mxu0 %v583
    %654 = vmatprep.subr.bf16.mxu0 0
    %655 = vmatpush1.bf16.msra.mxu0 %v584
    %656 = vmatprep.subr.bf16.mxu0 0
    %657 = vmatpush1.bf16.msra.mxu0 %v585
    %658 = vmatprep.subr.bf16.mxu0 0
    %659 = vmatpush1.bf16.msra.mxu0 %v586
    %660 = vmatprep.subr.bf16.mxu0 0
    %661 = vmatpush1.bf16.msra.mxu0 %v587
    %662 = vmatprep.subr.bf16.mxu0 0
    %663 = vmatpush1.bf16.msra.mxu0 %v588
    %664 = vmatprep.subr.bf16.mxu0 0
    %665 = vmatpush1.bf16.msra.mxu0 %v589
    %666 = vmatprep.subr.bf16.mxu0 0
    %667 = vmatpush1.bf16.msra.mxu0 %v590
    %668 = vmatprep.subr.bf16.mxu0 0
    %669 = vmatpush1.bf16.msra.mxu0 %v591
    %670 = vmatprep.subr.bf16.mxu0 0
    %671 = vmatpush1.bf16.msra.mxu0 %v592
    %672 = vmatprep.subr.bf16.mxu0 0
    %673 = vmatpush1.bf16.msra.mxu0 %v593
    %674 = vmatprep.mubr.bf16.mxu0 %v383
    %675 = vmatmul.mubr.bf16.gmra.mrb[0].mxu0 %v382
    %v676 = vpop.f32.mrb[0].mxu0
    %v677 = vadd.f32 0.0, %v676
    %v678 = vpop.f32.mrb[0].mxu0
    %v679 = vpop.f32.mrb[0].mxu0
    %v680 = vadd.f32 0.0, %v679
    %v681 = vpop.f32.mrb[0].mxu0
    %682 = vdwg.mxu0
    %683 = vmatprep.subr.bf16.mxu0 0
    %684 = vmatpush1.bf16.msra.mxu0 %v594
    %685 = vmatprep.subr.bf16.mxu0 0
    %686 = vmatpush1.bf16.msra.mxu0 %v595
    %687 = vmatprep.subr.bf16.mxu0 0
    %688 = vmatpush1.bf16.msra.mxu0 %v596
    %689 = vmatprep.subr.bf16.mxu0 0
    %690 = vmatpush1.bf16.msra.mxu0 %v597
    %691 = vmatprep.subr.bf16.mxu0 0
    %692 = vmatpush1.bf16.msra.mxu0 %v598
    %693 = vmatprep.subr.bf16.mxu0 0
    %694 = vmatpush1.bf16.msra.mxu0 %v599
    %695 = vmatprep.subr.bf16.mxu0 0
    %696 = vmatpush1.bf16.msra.mxu0 %v600
    %697 = vmatprep.subr.bf16.mxu0 0
    %698 = vmatpush1.bf16.msra.mxu0 %v601
    %699 = vmatprep.subr.bf16.mxu0 0
    %700 = vmatpush1.bf16.msra.mxu0 %v602
    %701 = vmatprep.subr.bf16.mxu0 0
    %702 = vmatpush1.bf16.msra.mxu0 %v603
    %703 = vmatprep.subr.bf16.mxu0 0
    %704 = vmatpush1.bf16.msra.mxu0 %v604
    %705 = vmatprep.subr.bf16.mxu0 0
    %706 = vmatpush1.bf16.msra.mxu0 %v605
    %707 = vmatprep.subr.bf16.mxu0 0
    %708 = vmatpush1.bf16.msra.mxu0 %v606
    %709 = vmatprep.subr.bf16.mxu0 0
    %710 = vmatpush1.bf16.msra.mxu0 %v607
    %711 = vmatprep.subr.bf16.mxu0 0
    %712 = vmatpush1.bf16.msra.mxu0 %v608
    %713 = vmatprep.subr.bf16.mxu0 0
    %714 = vmatpush1.bf16.msra.mxu0 %v609
    %715 = vmatprep.mubr.bf16.mxu0 %v385
    %716 = vmatmul.mubr.bf16.gmra.mrb[0].mxu0 %v384
    %v717 = vpop.f32.mrb[0].mxu0
    %v718 = vadd.f32 %v677, %v717
    %v719 = vpop.f32.mrb[0].mxu0
    %v720 = vpop.f32.mrb[0].mxu0
    %v721 = vadd.f32 %v680, %v720
    %v722 = vpop.f32.mrb[0].mxu0
    %723 = vdwg.mxu0
    %v724 = vadd.f32 %v380, %v718
    %v725 = vadd.f32 %v381, %v721
    %726 = vst [vmem:[#allocation2] sm:$0xff] %v724
    %727 = vst [vmem:[#allocation2 + $0x8] sm:$0xff] %v725
    // Predicated region
    $region38: #{tpu_custom_call.1} parent=1 // pred_check
      %p728 = pneg %p63
    $region39: #{tpu_custom_call.1} parent=1 // pred_check_branch
      %730 = sbr.rel (%p728) target = $region41
    $region40: #{tpu_custom_call.1} parent=1 // pred_region
      %v731 = vld [vmem:[#allocation2] sm:$0xff]
      %v732 = vld [vmem:[#allocation2 + $0x8] sm:$0xff]
      %v733 = vld [vmem:[%s4] sm:$0x1]
      %v735 = vlaneseq
      %v736 = vshrl.u32 %v735, 7
      %v737 = vsub.s32 0, %v736
      %v738 = vrot.slane %v733, %v737
      %v740 = vadd.f32 %v731, %v738
      %v741 = vadd.f32 %v732, %v738
      %742 = vst [vmem:[#allocation9] sm:$0xff] %v740
      %743 = vst [vmem:[#allocation9 + $0x8] sm:$0xff] %v741
    $region41: #{tpu_custom_call.1} parent=1 // pred_fallthru
      _
    // Predicated region
    $region42: #{tpu_custom_call.1} parent=1 // pred_check
      _
    $region43: #{tpu_custom_call.1} parent=1 // pred_check_branch
      %745 = sbr.rel (0) target = $region45
    $region44: #{tpu_custom_call.1} parent=1 // pred_region
      %s747 = ssub.s32 256, 256
      %748 = vsyncadd [#allocation5], %s747
      %s749 = sshll.u32 [#allocation9], 4
      %s750 = int_to_ptr.vmem [resolvable:$true] %s749
      %755 = dma.vmem_to_hbm [thread:$0]  %s750, 256, %s5, [#allocation5], 128, 128, 8
    $region45: #{tpu_custom_call.1} parent=1 // pred_fallthru
      _
    // Predicated region
    $region46: #{tpu_custom_call.1} parent=1 // pred_check
      _
    $region47: #{tpu_custom_call.1} parent=1 // pred_check_branch
      %757 = sbr.rel (0) target = $region49
    $region48: #{tpu_custom_call.1} parent=1 // pred_region
      %758 = dma.done [#allocation5], 256
    $region49: #{tpu_custom_call.1} parent=1 // pred_fallthru
      _
    %759 = vsyncpa [#allocation4], 1
    %760 = vsyncpa [#allocation7], 1
    %761 = vsyncpa [#allocation5], 1

</llo_original>
